<compile_context>
chip_gen: v5e
topology: v5e:2x2
jax: 0.10.0
libtpu: 0.0.40
codegen_flags: <defaults>
</compile_context>

<pallas_src>
import functools

import jax
import jax.numpy as jnp
from jax.experimental import pallas as pl
from jax.experimental.pallas import tpu as pltpu

BN_EPS = 1e-5
_LANE = 128


def _round_up(a, b):
    return (a + b - 1) // b * b


def _cdiv(a, b):
    return (a + b - 1) // b


def _vmem_capacity_bytes():
    """Physical VMEM per core (128 MiB on v5e/v6e, 64 MiB on v7x)."""
    try:
        info = pltpu.get_tpu_info()
        cap = getattr(info, "vmem_capacity_bytes", None)
        if cap:
            return int(cap)
    except Exception:
        pass
    return 64 * 1024 * 1024  # conservative (v7x-sized)


# ---------------------------------------------------------------------------
# Pass 1: global BN statistics on centered x. For each N-block i it accumulates
#   xsum_i = sum_t (x - c)           (Cin, 1)
#   gram_i = sum_t (x - c)(x - c)^T  (Cin, Cin)
# Per-i output blocks stay resident across the t axis (init at t == 0);
# partials are summed in plain JAX afterwards (lets the N axis be "parallel").
# Optionally also writes a bf16 copy of x (fused cast for the bf16 matmul path).
# ---------------------------------------------------------------------------
def _stats_kernel(x_ref, c_ref, gram_ref, xsum_ref, xbf_ref=None, *,
                  nb, mask_tail, hw, tile_hw):
    t = pl.program_id(1)

    @pl.when(t == 0)
    def _init():
        gram_ref[...] = jnp.zeros_like(gram_ref)
        xsum_ref[...] = jnp.zeros_like(xsum_ref)

    c = c_ref[...]                                       # (Cin, 1)
    for b in range(nb):                                  # small static unroll
        xt = x_ref[b]                                    # (Cin, tile_hw) f32
        if xbf_ref is not None:
            xbf_ref[b] = xt.astype(jnp.bfloat16)         # fused f32->bf16 cast
        u = xt - c                                       # centered for stability
        if mask_tail:                                    # zero OOB tail columns
            col = jax.lax.broadcasted_iota(jnp.int32, u.shape, 1)
            u = jnp.where(t * tile_hw + col < hw, u, 0.0)
        # u @ u^T: contract the lane axis of both operands (same pattern as
        # q @ k^T in flash attention; no explicit transpose of the wide tile).
        gram_ref[...] += jax.lax.dot_general(
            u, u, dimension_numbers=(((1,), (1,)), ((), ())),
            preferred_element_type=jnp.float32)
        xsum_ref[...] += jnp.sum(u, axis=1, keepdims=True)


# ---------------------------------------------------------------------------
# Pass 2: fully parallel, lane-dense fused conv + BN affine:
#   out_tile = (scale * W) @ x_tile + shift
# ---------------------------------------------------------------------------
def _transform_kernel(x_ref, ws_ref, shift_ref, o_ref, *, nb):
    ws = ws_ref[...]                                     # (Cout, Cin)
    shift = shift_ref[...]                               # (Cout, 1)
    for b in range(nb):
        y = jnp.dot(ws, x_ref[b], preferred_element_type=jnp.float32)
        o_ref[b] = (y + shift).astype(o_ref.dtype)


def mapping_forward(x_nchw, conv_w, bn_gamma, bn_beta, *,
                    eps=BN_EPS, matmul_dtype=None, out_dtype=jnp.float32):
    """Forward of Mapping: BatchNorm2d(Conv2d_1x1(x)), training-mode batch stats.

    x_nchw: (N, Cin, H, W); conv_w: (Cout, Cin, 1, 1); bn_gamma/bn_beta: (Cout,)
    matmul_dtype: jnp.bfloat16 halves the pass-2 x read (recommended on v5e);
      BN statistics / folding stay f32. Default None = full f32 (PyTorch match).
    out_dtype: output dtype (bf16 halves output traffic; diverges from PyTorch).
    """
    N, Cin, H, W = x_nchw.shape
    Cout = conv_w.shape[0]
    HW = H * W
    M = N * HW

    x3 = x_nchw.reshape(N, Cin, HW).astype(jnp.float32)  # pure reshape, no transpose
    w = conv_w.reshape(Cout, Cin).astype(jnp.float32)
    emit_bf16 = matmul_dtype == jnp.bfloat16

    # --- per-generation VMEM budgets ------------------------------------------
    vmem_cap = _vmem_capacity_bytes()
    if vmem_cap >= 96 * 1024 * 1024:        # v5e / v6e: 128 MiB physical
        buf_budget = 40 * 1024 * 1024
        vmem_limit = 64 * 1024 * 1024
    else:                                   # v7x: 64 MiB physical, stay well under
        buf_budget = 12 * 1024 * 1024
        vmem_limit = 40 * 1024 * 1024

    # --- tile sizing: lane-dense, sized against the budget --------------------
    # Fixed (non-column-scaling) consumers: w_scaled/shift/c blocks, the per-block
    # gram/xsum partial accumulators (double-buffered), plus scratch headroom.
    fixed = 2 * (Cout * Cin * 4 + (Cout + 2 * Cin) * _LANE * 4 + Cin * Cin * 4)
    headroom = 2 * 1024 * 1024
    per_col = 2 * (Cin * 4 + Cout * 4 + (Cin * 2 if emit_bf16 else 0))
    cols_cap = max(_LANE, ((buf_budget - fixed - headroom) // per_col) // _LANE * _LANE)

    tile_hw = min(_round_up(HW, _LANE), cols_cap)
    hw_tiles = _cdiv(HW, tile_hw)
    nb = 1
    if hw_tiles == 1:
        if N > 1:
            # Amortize the ~0.35us/step overhead by packing several batch items
            # per step, but keep >= 2 N-blocks so both v7x cores get work.
            nb_cap = max(1, min(N // 2, cols_cap // tile_hw, 8))
            for d in range(nb_cap, 0, -1):
                if N % d == 0:
                    nb = d
                    break
        elif HW > _LANE:
            # N == 1 and a single HW tile: split so the parallel grid has >= 2 steps.
            tile_hw = _round_up(_cdiv(HW, 2), _LANE)
            hw_tiles = _cdiv(HW, tile_hw)
    n_blocks = N // nb
    grid = (n_blocks, hw_tiles)
    mask_tail = (HW % tile_hw) != 0   # stats kernel zeroes the OOB tail columns

    # Cheap per-channel offset from a small slice: centering the Gram
    # accumulation avoids catastrophic cancellation in the f32 variance.
    c = jnp.mean(x3[:, :, :min(HW, 1024)], axis=(0, 2)).reshape(Cin, 1)

    # ------------------------- pass 1: batch statistics -----------------------
    stats_outs = [jax.ShapeDtypeStruct((n_blocks, Cin, Cin), jnp.float32),
                  jax.ShapeDtypeStruct((n_blocks, Cin, 1), jnp.float32)]
    stats_out_specs = [pl.BlockSpec((None, Cin, Cin), lambda i, t: (i, 0, 0)),
                       pl.BlockSpec((None, Cin, 1), lambda i, t: (i, 0, 0))]
    stats_bytes = M * Cin * 4 + n_blocks * (Cin * Cin + Cin) * 4 + Cin * 4
    if emit_bf16:
        stats_outs.append(jax.ShapeDtypeStruct((N, Cin, HW), jnp.bfloat16))
        stats_out_specs.append(
            pl.BlockSpec((nb, Cin, tile_hw), lambda i, t: (i, 0, t)))
        stats_bytes += M * Cin * 2

    stats = pl.pallas_call(
        functools.partial(_stats_kernel, nb=nb, mask_tail=mask_tail,
                          hw=HW, tile_hw=tile_hw),
        out_shape=tuple(stats_outs),
        grid_spec=pltpu.PrefetchScalarGridSpec(
            num_scalar_prefetch=0,
            grid=grid,
            in_specs=[pl.BlockSpec((nb, Cin, tile_hw), lambda i, t: (i, 0, t)),
                      pl.BlockSpec((Cin, 1), lambda i, t: (0, 0))],
            out_specs=tuple(stats_out_specs),
        ),
        compiler_params=pltpu.CompilerParams(
            dimension_semantics=("parallel", "arbitrary"),
            vmem_limit_bytes=vmem_limit),
        cost_estimate=pl.CostEstimate(
            flops=2 * M * Cin * Cin, transcendentals=0,
            bytes_accessed=stats_bytes),
    )(x3, c)

    if emit_bf16:
        gram_p, xsum_p, x_in = stats
    else:
        gram_p, xsum_p = stats
        x_in = x3

    # Fold training-mode BN into per-output-channel scale/shift (global stats,
    # true M in the denominators; centered covariance + clamp for stability).
    gram = jnp.sum(gram_p, axis=0)                       # (Cin, Cin)
    xbar_u = jnp.sum(xsum_p, axis=0) / M                 # (Cin, 1), mean of (x - c)
    mean_x = c + xbar_u                                  # (Cin, 1)
    cov_x = gram / M - xbar_u @ xbar_u.T                 # (Cin, Cin)
    mean_y = (w @ mean_x)[:, 0]                          # (Cout,)
    var_y = jnp.maximum(jnp.einsum('oc,cd,od->o', w, cov_x, w), 0.0)
    inv_std = jax.lax.rsqrt(var_y + eps)
    scale = bn_gamma.astype(jnp.float32) * inv_std       # (Cout,)
    shift = (bn_beta.astype(jnp.float32) - mean_y * scale).reshape(Cout, 1)
    w_scaled = w * scale[:, None]                        # (Cout, Cin)
    if emit_bf16:
        w_scaled = w_scaled.astype(jnp.bfloat16)

    # ------------------- pass 2: fused conv + BN (fully parallel) -------------
    out3 = pl.pallas_call(
        functools.partial(_transform_kernel, nb=nb),
        out_shape=jax.ShapeDtypeStruct((N, Cout, HW), out_dtype),
        grid_spec=pltpu.PrefetchScalarGridSpec(
            num_scalar_prefetch=0,
            grid=grid,
            in_specs=[
                pl.BlockSpec((nb, Cin, tile_hw), lambda i, t: (i, 0, t)),
                pl.BlockSpec((Cout, Cin), lambda i, t: (0, 0)),
                pl.BlockSpec((Cout, 1), lambda i, t: (0, 0)),
            ],
            out_specs=pl.BlockSpec((nb, Cout, tile_hw), lambda i, t: (i, 0, t)),
        ),
        compiler_params=pltpu.CompilerParams(
            dimension_semantics=("parallel", "parallel"),
            vmem_limit_bytes=vmem_limit),
        cost_estimate=pl.CostEstimate(
            flops=2 * M * Cin * Cout,
            transcendentals=0,
            bytes_accessed=(x_in.size * x_in.dtype.itemsize
                            + w_scaled.size * w_scaled.dtype.itemsize
                            + Cout * 4
                            + M * Cout * jnp.dtype(out_dtype).itemsize)),
    )(x_in, w_scaled, shift)

    # TODO(synk): PyTorch BatchNorm2d in training mode also updates
    # running_mean/running_var buffers; that stateful side effect is not
    # surfaced here (forward output matches training-mode batch statistics).
    # TODO(synk): for strong channel reduction (Cout < Cin/2) a y-first scheme
    # (write y once, normalize in place) moves fewer HBM bytes; not implemented.
    return out3.reshape(N, Cout, H, W)


def _reference_forward(x, conv_w, gamma, beta, eps=BN_EPS):
    """Pure-JAX reference: 1x1 conv (no bias) + training-mode BatchNorm2d."""
    Cout, Cin = conv_w.shape[0], conv_w.shape[1]
    y = jnp.einsum('oc,nchw->nohw', conv_w.reshape(Cout, Cin), x)
    mean = jnp.mean(y, axis=(0, 2, 3), keepdims=True)
    var = jnp.mean((y - mean) ** 2, axis=(0, 2, 3), keepdims=True)
    return ((y - mean) * jax.lax.rsqrt(var + eps)
            * gamma.reshape(1, -1, 1, 1) + beta.reshape(1, -1, 1, 1))


if __name__ == "__main__":
    N, Cin, H, W = 2, 4, 16, 16
    Cout = 8

    key = jax.random.PRNGKey(0)
    kx, kw = jax.random.split(key)

    x = jax.random.normal(kx, (N, Cin, H, W), dtype=jnp.float32)

    # Conv2d(Cin, Cout, 1, 1, bias=False) kaiming-uniform-like init;
    # BatchNorm2d defaults: gamma=1, beta=0.
    bound = 1.0 / (Cin ** 0.5)
    conv_w = jax.random.uniform(kw, (Cout, Cin, 1, 1), dtype=jnp.float32,
                                minval=-bound, maxval=bound)
    bn_gamma = jnp.ones((Cout,), dtype=jnp.float32)
    bn_beta = jnp.zeros((Cout,), dtype=jnp.float32)

    out = mapping_forward(x, conv_w, bn_gamma, bn_beta)
    jax.block_until_ready(out)

    assert out.shape == (N, Cout, H, W), out.shape

    ref = _reference_forward(x, conv_w, bn_gamma, bn_beta)
    max_err = float(jnp.max(jnp.abs(out - ref)))
    assert max_err < 5e-2, f"max |out - ref| = {max_err}"

    print("KERNEL_OK")
</pallas_src>

<mosaic_0001>
module attributes {stable_mosaic.version = 11 : i64} {
  func.func @_stats_kernel(%arg0: i32, %arg1: i32, %arg2: memref<1x4x256xf32, #tpu.memory_space<vmem>>, %arg3: memref<4x1xf32, #tpu.memory_space<vmem>>, %arg4: memref<1x4x4xf32, #tpu.memory_space<vmem>>, %arg5: memref<1x4x1xf32, #tpu.memory_space<vmem>>) attributes {dimension_semantics = [#tpu.dimension_semantics<parallel>, #tpu.dimension_semantics<arbitrary>], iteration_bounds = array<i64: 2, 1>, scalar_prefetch = 0 : i64, scratch_operands = 0 : i64, tpu.core_type = #tpu.core_type<tc>, window_params = [{transform_indices = @transform_0, window_bounds = array<i64: 1, 4, 256>}, {pipeline_mode = #tpu.pipeline_mode<synchronous>, transform_indices = @transform_1, window_bounds = array<i64: 4, 1>}, {transform_indices = @transform_2, window_bounds = array<i64: 1, 4, 4>}, {transform_indices = @transform_3, window_bounds = array<i64: 1, 4, 1>}]} {
    %c0_i32 = arith.constant 0 : i32
    %0 = arith.cmpi eq, %arg1, %c0_i32 : i32
    %1 = arith.extui %0 : i1 to i32
    %c0_i32_0 = arith.constant 0 : i32
    %2 = arith.cmpi ne, %1, %c0_i32_0 : i32
    scf.if %2 {
      %cst_18 = arith.constant 0.000000e+00 : f32
      %23 = vector.broadcast %cst_18 : f32 to vector<4x4xf32>
      %c0_19 = arith.constant 0 : index
      %c0_20 = arith.constant 0 : index
      %c0_21 = arith.constant 0 : index
      %24 = vector.load %arg4[%c0_19, %c0_20, %c0_21] : memref<1x4x4xf32, #tpu.memory_space<vmem>>, vector<1x4x4xf32>
      %25 = vector.shape_cast %24 : vector<1x4x4xf32> to vector<4x4xf32>
      %26 = vector.shape_cast %23 : vector<4x4xf32> to vector<1x4x4xf32>
      tpu.vector_store %arg4[%c0_19, %c0_20, %c0_21], %26 {strides = array<i32>} : memref<1x4x4xf32, #tpu.memory_space<vmem>>, vector<1x4x4xf32>,
      %cst_22 = arith.constant 0.000000e+00 : f32
      %27 = vector.broadcast %cst_22 : f32 to vector<4x1xf32>
      %c0_23 = arith.constant 0 : index
      %c0_24 = arith.constant 0 : index
      %c0_25 = arith.constant 0 : index
      %28 = vector.load %arg5[%c0_23, %c0_24, %c0_25] : memref<1x4x1xf32, #tpu.memory_space<vmem>>, vector<1x4x1xf32>
      %29 = vector.shape_cast %28 : vector<1x4x1xf32> to vector<4x1xf32>
      %30 = vector.shape_cast %27 : vector<4x1xf32> to vector<1x4x1xf32>
      tpu.vector_store %arg5[%c0_23, %c0_24, %c0_25], %30 {strides = array<i32>} : memref<1x4x1xf32, #tpu.memory_space<vmem>>, vector<1x4x1xf32>,
    } else {
    }
    %c0 = arith.constant 0 : index
    %c0_1 = arith.constant 0 : index
    %3 = vector.load %arg3[%c0, %c0_1] : memref<4x1xf32, #tpu.memory_space<vmem>>, vector<4x1xf32>
    %c0_2 = arith.constant 0 : index
    %c0_3 = arith.constant 0 : index
    %c0_4 = arith.constant 0 : index
    %4 = vector.load %arg2[%c0_2, %c0_3, %c0_4] : memref<1x4x256xf32, #tpu.memory_space<vmem>>, vector<1x4x256xf32>
    %5 = vector.shape_cast %4 : vector<1x4x256xf32> to vector<4x256xf32>
    %6 = vector.broadcast %3 : vector<4x1xf32> to vector<4x256xf32>
    %7 = arith.subf %5, %6 : vector<4x256xf32>
    %c0_5 = arith.constant 0 : index
    %c0_6 = arith.constant 0 : index
    %c0_7 = arith.constant 0 : index
    %8 = vector.load %arg4[%c0_5, %c0_6, %c0_7] : memref<1x4x4xf32, #tpu.memory_space<vmem>>, vector<1x4x4xf32>
    %9 = vector.shape_cast %8 : vector<1x4x4xf32> to vector<4x4xf32>
    %cst = arith.constant dense<0.000000e+00> : vector<4x4xf32>
    %10 = tpu.matmul %7, %7, %cst {dimension_numbers = #tpu.dot_dimension_numbers<[1], [1], [0], [0], [0, 0, 1, 0], [], []>} : vector<4x256xf32>, vector<4x256xf32>, vector<4x4xf32> -> vector<4x4xf32>
    %11 = arith.addf %9, %10 : vector<4x4xf32>
    %c0_8 = arith.constant 0 : index
    %c0_9 = arith.constant 0 : index
    %c0_10 = arith.constant 0 : index
    %12 = vector.load %arg4[%c0_8, %c0_9, %c0_10] : memref<1x4x4xf32, #tpu.memory_space<vmem>>, vector<1x4x4xf32>
    %13 = vector.shape_cast %12 : vector<1x4x4xf32> to vector<4x4xf32>
    %14 = vector.shape_cast %11 : vector<4x4xf32> to vector<1x4x4xf32>
    tpu.vector_store %arg4[%c0_8, %c0_9, %c0_10], %14 {strides = array<i32>} : memref<1x4x4xf32, #tpu.memory_space<vmem>>, vector<1x4x4xf32>,
    %c0_11 = arith.constant 0 : index
    %c0_12 = arith.constant 0 : index
    %c0_13 = arith.constant 0 : index
    %15 = vector.load %arg5[%c0_11, %c0_12, %c0_13] : memref<1x4x1xf32, #tpu.memory_space<vmem>>, vector<1x4x1xf32>
    %16 = vector.shape_cast %15 : vector<1x4x1xf32> to vector<4x1xf32>
    %cst_14 = arith.constant dense<0.000000e+00> : vector<4xf32>
    %17 = vector.multi_reduction <add>, %7, %cst_14 [1] : vector<4x256xf32> to vector<4xf32>
    %18 = vector.shape_cast %17 : vector<4xf32> to vector<4x1xf32>
    %19 = arith.addf %16, %18 : vector<4x1xf32>
    %c0_15 = arith.constant 0 : index
    %c0_16 = arith.constant 0 : index
    %c0_17 = arith.constant 0 : index
    %20 = vector.load %arg5[%c0_15, %c0_16, %c0_17] : memref<1x4x1xf32, #tpu.memory_space<vmem>>, vector<1x4x1xf32>
    %21 = vector.shape_cast %20 : vector<1x4x1xf32> to vector<4x1xf32>
    %22 = vector.shape_cast %19 : vector<4x1xf32> to vector<1x4x1xf32>
    tpu.vector_store %arg5[%c0_15, %c0_16, %c0_17], %22 {strides = array<i32>} : memref<1x4x1xf32, #tpu.memory_space<vmem>>, vector<1x4x1xf32>,
    return
  }
  func.func @transform_0(%arg0: i32, %arg1: i32) -> (i32, i32, i32) {
    %c0_i32 = arith.constant 0 : i32
    %c0_i32_0 = arith.constant 0 : i32
    return %arg0, %c0_i32, %arg1 : i32, i32, i32
  }
  func.func @transform_1(%arg0: i32, %arg1: i32) -> (i32, i32) {
    %c0_i32 = arith.constant 0 : i32
    %c0_i32_0 = arith.constant 0 : i32
    %c0_i32_1 = arith.constant 0 : i32
    return %c0_i32, %c0_i32_0 : i32, i32
  }
  func.func @transform_2(%arg0: i32, %arg1: i32) -> (i32, i32, i32) {
    %c0_i32 = arith.constant 0 : i32
    %c0_i32_0 = arith.constant 0 : i32
    %c0_i32_1 = arith.constant 0 : i32
    return %arg0, %c0_i32, %c0_i32_0 : i32, i32, i32
  }
  func.func @transform_3(%arg0: i32, %arg1: i32) -> (i32, i32, i32) {
    %c0_i32 = arith.constant 0 : i32
    %c0_i32_0 = arith.constant 0 : i32
    %c0_i32_1 = arith.constant 0 : i32
    return %arg0, %c0_i32, %c0_i32_0 : i32, i32, i32
  }
}

</mosaic_0001>

<llo_original>
// kernel: tpu_custom_call.1
$region0: #{tpu_custom_call.1}
  #allocation0 [shape = 'u32[]', space=smem, size = 0x4, offset = 0x4, fixed_abs, tag = 'smem constant byte address 0x4 - core index']
  #allocation1 [shape = 'u32[72,128]{1,0:T(1,128)}', space=vmem, size = 0x9000, scoped, tag = 'internal scratch']
  %s0 = inlined_call_operand.hbm [shape: f32[2,4,256], index: 0, kind: input, shape index: {}]
  %s1 = inlined_call_operand.vmem [shape: f32[4,1], index: 1, kind: input, shape index: {}]
  %s2 = inlined_call_operand.hbm [shape: f32[2,4,4], index: 2, kind: output, shape index: {0}]
  %s3 = inlined_call_operand.vmem [shape: f32[2,4,1], index: 3, kind: output, shape index: {1}]
  %4 = xla_tuple %s2, %s3
  %s5 = sld [smem:[#allocation0]]
  $region57: #{tpu_custom_call.1} parent=0
    _
  %s7 = ssub.s32 1, %s5
  %s8 = scalar_select 0, %s7, %s5
  $region1: #{tpu_custom_call.1} parent=0
    #allocation2 [shape = 'u8[8192]{0}', space=vmem, size = 0x2000, scoped, tag = 'input window, operand 0']
    #allocation3 [shape = 's32[2]{0}', space=sflag, size = 0x8, scoped, tag = 'scoped memory for tpu_custom_call.1']
    #allocation4 [shape = 's32[2]{0}', space=sflag, size = 0x8, scoped, tag = 'scoped memory for tpu_custom_call.1']
    #allocation5 [shape = 'u8[4096]{0}', space=vmem, size = 0x1000, scoped, tag = 'output window, operand 0']
    %9 = vsyncpa [#allocation3], 0
    %s10 = scalar_lea.sflag [#allocation3], 1
    %11 = vsyncpa %s10, 0
    %12 = vsyncpa [#allocation4], 0
    %s13 = scalar_lea.sflag [#allocation4], 1
    %14 = vsyncpa %s13, 0
    loop: start=0, step=1, limit=4
    $region2: #{tpu_custom_call.1} parent=1 // loop_pre_header
      _
    $region3: #{tpu_custom_call.1} parent=1 // loop_header
      %s16 = sphi 0, %s20
      %p17 = scmp.ge.s32.totalorder %s16, 4
      %s23 = sphi 0, %s35
      %s24 = sphi 0, %s31
      %s25 = sphi 0, %s23
      %s26 = sphi 0, %s24
      %s27 = sphi 0, %s25
      %s28 = sphi 0, %s26
      %s40 = sphi 0, %s42
      %s43 = sphi 0, %s40
      %s44 = sphi 0, %s43
      %s60 = sphi 0, %s44
      %s64 = sphi 0, %s64
      %s66 = sphi 0, %s64
      %s67 = sphi 0, %s66
      %s81 = sphi 0, %s67
      %s87 = sphi 0, %s89
      %s90 = sphi 0, %s87
      %s91 = sphi 0, %s90
      %s107 = sphi 0, %s91
      %s113 = sphi 0, %s115
      %s116 = sphi 0, %s113
      %s117 = sphi 0, %s116
      %s133 = sphi 0, %s117
    $region4: #{tpu_custom_call.1} parent=1 // loop_header_branch
      %19 = sbr.rel (%p17) target = $region8
    $region5: #{tpu_custom_call.1} parent=1 // loop_body
      %s21 = ssub.s32 %s16, 1
      %s22 = ssub.s32 %s16, 2
      %s29 = sadd.s32 1, %s24
      %p30 = scmp.ge.s32.totalorder %s29, 1
      %s31 = scalar_select %p30, 0, %s29
      %s32 = sadd.s32 1, %s23
      %s33 = scalar_select %p30, %s32, %s23
      %p34 = scmp.ge.s32.totalorder %s33, 2
      %s35 = scalar_select %p34, 0, %s33
      %s36 = ssub.s32 %s23, %s35
      %s37 = ssub.s32 %s24, %s31
      %s38 = sor.u32 %s36, %s37
      %p39 = scmp.eq.s32.totalorder %s38, 0
      %s41 = sadd.s32 %s40, 1
      %s42 = scalar_select %p39, %s40, %s41
      %p45 = pneg %p39
      %p46 = scmp.eq.s32.totalorder %s16, 1
      %p47 = por %p45, %p46
      %p48 = scmp.ne.s32.totalorder %s40, %s43
      %p49 = scmp.eq.s32.totalorder %s16, 0
      %p50 = por %p48, %p49
      %p51 = scmp.ne.s32.totalorder %s40, %s43
      %p52 = scmp.eq.s32.totalorder %s21, 1
      %p53 = por %p51, %p52
      %p54 = scmp.ne.s32.totalorder %s43, %s44
      %p55 = scmp.eq.s32.totalorder %s21, 0
      %p56 = por %p54, %p55
      %p57 = scmp.ne.s32.totalorder %s43, %s44
      %p58 = scmp.eq.s32.totalorder %s22, 1
      %p59 = por %p57, %p58
      %p61 = scmp.ne.s32.totalorder %s44, %s60
      %p62 = scmp.eq.s32.totalorder %s22, 0
      %p63 = por %p61, %p62
      %s65 = sadd.s32 %s64, 1
      %p68 = scmp.eq.s32.totalorder %s16, 1
      %p69 = scmp.ne.s32.totalorder %s64, %s66
      %p70 = scmp.eq.s32.totalorder %s16, 0
      %p71 = por %p69, %p70
      %p72 = scmp.ne.s32.totalorder %s64, %s66
      %p73 = scmp.eq.s32.totalorder %s21, 1
      %p74 = por %p72, %p73
      %p75 = scmp.ne.s32.totalorder %s66, %s67
      %p76 = scmp.eq.s32.totalorder %s21, 0
      %p77 = por %p75, %p76
      %p78 = scmp.ne.s32.totalorder %s66, %s67
      %p79 = scmp.eq.s32.totalorder %s22, 1
      %p80 = por %p78, %p79
      %p82 = scmp.ne.s32.totalorder %s67, %s81
      %p83 = scmp.eq.s32.totalorder %s22, 0
      %p84 = por %p82, %p83
      %s85 = ssub.s32 %s23, %s35
      %p86 = scmp.eq.s32.totalorder %s85, 0
      %s88 = sadd.s32 %s87, 1
      %s89 = scalar_select %p86, %s87, %s88
      %p92 = pneg %p86
      %p93 = scmp.eq.s32.totalorder %s16, 1
      %p94 = por %p92, %p93
      %p95 = scmp.ne.s32.totalorder %s87, %s90
      %p96 = scmp.eq.s32.totalorder %s16, 0
      %p97 = por %p95, %p96
      %p98 = scmp.ne.s32.totalorder %s87, %s90
      %p99 = scmp.eq.s32.totalorder %s21, 1
      %p100 = por %p98, %p99
      %p101 = scmp.ne.s32.totalorder %s90, %s91
      %p102 = scmp.eq.s32.totalorder %s21, 0
      %p103 = por %p101, %p102
      %p104 = scmp.ne.s32.totalorder %s90, %s91
      %p105 = scmp.eq.s32.totalorder %s22, 1
      %p106 = por %p104, %p105
      %p108 = scmp.ne.s32.totalorder %s91, %s107
      %p109 = scmp.eq.s32.totalorder %s22, 0
      %p110 = por %p108, %p109
      %s111 = ssub.s32 %s23, %s35
      %p112 = scmp.eq.s32.totalorder %s111, 0
      %s114 = sadd.s32 %s113, 1
      %s115 = scalar_select %p112, %s113, %s114
      %p118 = pneg %p112
      %p119 = scmp.eq.s32.totalorder %s16, 1
      %p120 = por %p118, %p119
      %p121 = scmp.ne.s32.totalorder %s113, %s116
      %p122 = scmp.eq.s32.totalorder %s16, 0
      %p123 = por %p121, %p122
      %p124 = scmp.ne.s32.totalorder %s113, %s116
      %p125 = scmp.eq.s32.totalorder %s21, 1
      %p126 = por %p124, %p125
      %p127 = scmp.ne.s32.totalorder %s116, %s117
      %p128 = scmp.eq.s32.totalorder %s21, 0
      %p129 = por %p127, %p128
      %p130 = scmp.ne.s32.totalorder %s116, %s117
      %p131 = scmp.eq.s32.totalorder %s22, 1
      %p132 = por %p130, %p131
      %p134 = scmp.ne.s32.totalorder %s117, %s133
      %p135 = scmp.eq.s32.totalorder %s22, 0
      %p136 = por %p134, %p135
      %p137 = scmp.le.s32.totalorder 1, %s16
      %p138 = scmp.lt.s32.totalorder %s16, 3
      %p139 = pnand %p137, %p138
      %p140 = pneg %p139
      // Predicated region
      $region9: #{tpu_custom_call.1} parent=5 // pred_check
        _
      $region10: #{tpu_custom_call.1} parent=5 // pred_check_branch
        %142 = sbr.rel (%p139) target = $region12
      $region11: #{tpu_custom_call.1} parent=5 // pred_region
        %s143 = ssub.s32 %s16, 1
        // Predicated region
        $region13: #{tpu_custom_call.1} parent=11 // pred_check
          %p144 = pneg %p77
        $region14: #{tpu_custom_call.1} parent=11 // pred_check_branch
          %146 = sbr.rel (%p144) target = $region16
        $region15: #{tpu_custom_call.1} parent=11 // pred_region
          _
        $region16: #{tpu_custom_call.1} parent=11 // pred_fallthru
          _
      $region12: #{tpu_custom_call.1} parent=5 // pred_fallthru
        _
      %p147 = scmp.lt.s32.totalorder %s16, 2
      // Predicated region
      $region17: #{tpu_custom_call.1} parent=5 // pred_check
        %p148 = pneg %p147
      $region18: #{tpu_custom_call.1} parent=5 // pred_check_branch
        %150 = sbr.rel (%p148) target = $region20
      $region19: #{tpu_custom_call.1} parent=5 // pred_region
        // Predicated region
        $region21: #{tpu_custom_call.1} parent=19 // pred_check
          %p151 = pneg %p50
        $region22: #{tpu_custom_call.1} parent=19 // pred_check_branch
          %153 = sbr.rel (%p151) target = $region24
        $region23: #{tpu_custom_call.1} parent=19 // pred_region
          %s154 = sand.u32 %s40, 1
          %s155 = scalar_lea.sflag [#allocation3], %s154
          %s156 = sand.u32 %s40, 1
          %s157 = smul.addr %s156, 8
          %s158 = scalar_lea.vmem [#allocation2], %s157
          %s159 = smul.u32 2, %s24
          %161 = vsyncadd %s155, 0
          %s162 = smul.addr %s23, 2
          %s163 = sadd.s32 %s159, %s162
          %s164 = smul.addr %s163, 4
          %s165 = scalar_lea.hbm %s0, %s164
          %s167 = sshll.u32 %s165, 4
          %s168 = int_to_ptr.hbm [resolvable:$true] %s167
          %s169 = sshll.u32 %s158, 4
          %s170 = int_to_ptr.vmem [resolvable:$true] %s169
          %172 = dma.hbm_to_vmem [thread:$0]  %s168, 128, %s170, %s155
        $region24: #{tpu_custom_call.1} parent=19 // pred_fallthru
          _
      $region20: #{tpu_custom_call.1} parent=5 // pred_fallthru
        _
      %p173 = scmp.le.s32.totalorder 1, %s16
      %p174 = scmp.lt.s32.totalorder %s16, 3
      %p175 = pnand %p173, %p174
      %p176 = pneg %p175
      // Predicated region
      $region25: #{tpu_custom_call.1} parent=5 // pred_check
        _
      $region26: #{tpu_custom_call.1} parent=5 // pred_check_branch
        %178 = sbr.rel (%p175) target = $region28
      $region27: #{tpu_custom_call.1} parent=5 // pred_region
        %s179 = ssub.s32 %s16, 1
        %s180 = sand.u32 %s43, 1
        %s181 = scalar_lea.sflag [#allocation3], %s180
        %s182 = sand.u32 %s43, 1
        %s183 = smul.addr %s182, 8
        %s184 = scalar_lea.vmem [#allocation2], %s183
        // Predicated region
        $region29: #{tpu_custom_call.1} parent=27 // pred_check
          %p185 = pneg %p56
        $region30: #{tpu_custom_call.1} parent=27 // pred_check_branch
          %187 = sbr.rel (%p185) target = $region32
        $region31: #{tpu_custom_call.1} parent=27 // pred_region
          %189 = dma.done %s181, 128
        $region32: #{tpu_custom_call.1} parent=27 // pred_fallthru
          _
        %s190 = sand.u32 %s43, 1
        %s191 = scalar_lea.sflag [#allocation3], %s190
        %s192 = sand.u32 %s43, 1
        %s193 = smul.addr %s192, 8
        %s194 = scalar_lea.vmem [#allocation2], %s193
        %p195 = pneg %p56
        %p196 = pneg %p53
        %p197 = pneg %p77
        %p198 = pneg %p74
        %p199 = pneg %p103
        %p200 = pneg %p100
        %s201 = sand.u32 %s90, 1
        %s202 = scalar_lea.sflag [#allocation4], %s201
        %s203 = sand.u32 %s90, 1
        %s204 = smul.addr %s203, 4
        %s205 = scalar_lea.vmem [#allocation5], %s204
        %p206 = pneg %p129
        %p207 = pneg %p126
        %p208 = scmp.lt.s32.totalorder %s25, 1
        %s209 = scalar_select %p208, %s25, 1
        %s210 = smul.addr %s209, 4
        %s211 = scalar_lea.vmem %s3, %s210
        %s212 = smul.u32 2, %s26
        %p213 = scmp.lt.s32.totalorder %s25, 1
        %s214 = scalar_select %p213, %s25, 1
        %s215 = smul.addr %s214, 4
        %s216 = scalar_lea.vmem %s3, %s215
        %p217 = scmp.eq.s32.totalorder %s26, 0
        // Predicated region
        $region33: #{tpu_custom_call.1} parent=27 // pred_check
          %p218 = pneg %p217
        $region34: #{tpu_custom_call.1} parent=27 // pred_check_branch
          %220 = sbr.rel (%p218) target = $region36
        $region35: #{tpu_custom_call.1} parent=27 // pred_region
          %vm221 = vcmask 27648
          %222 = vst.msk [vmem:[%s205] sm:$0xf] %vm221, 0.0
          %vm223 = vcmask 3072
          %224 = vst.msk [vmem:[%s216] sm:$0xf] %vm223, 0.0
        $region36: #{tpu_custom_call.1} parent=27 // pred_fallthru
          _
        %v225 = vld [vmem:[%s1] sm:$0xf]
        %v226 = vld [vmem:[%s184] sm:$0xff]
        %228 = vset.pattern.permute.xlu0 0
        %229 = vperm.xlu0 %228, %v225
        %v230 = vpop.permute.xlu0 %229
        %v232 = vunpack.c.l.s4 839922192
        %v233 = vunpack.c.0.s8 %v232
        %v234 = vperm.slane %v230, %v233
        %v236 = vsub.f32 %v226, %v234
        %v237 = vld [vmem:[%s205] sm:$0xf]
        %239 = vst [vmem:[#allocation1] ss:$2 sm:$0xff] %v236
        %v240 = vld.sshfl [vmem:[#allocation1] sm:$0xff pattern:$0x75316420]
        %v241 = vld.sshfl [vmem:[#allocation1 + $0x8] sm:$0xff pattern:$0x75316420]
        %244 = vst [vmem:[#allocation1] ss:$2 sm:$0xff] %v236
        %v245 = vld.sshfl [vmem:[#allocation1] sm:$0xff pattern:$0x75316420]
        %v246 = vld.sshfl [vmem:[#allocation1 + $0x8] sm:$0xff pattern:$0x75316420]
        %249 = vmatpush.xpose.msra.mxu0 0.0
        %250 = vmatpush.xpose.msra.mxu0 0.0
        %251 = vmatpush.xpose.msra.mxu0 0.0
        %252 = vmatpush.xpose.msra.mxu0 0.0
        %253 = vmatpush.xpose.msra.mxu0 0.0
        %254 = vmatpush.xpose.msra.mxu0 0.0
        %255 = vmatpush.xpose.msra.mxu0 0.0
        %256 = vmatpush.xpose.msra.mxu0 0.0
        %257 = vmatpush.xpose.msra.mxu0 0.0
        %258 = vmatpush.xpose.msra.mxu0 0.0
        %259 = vmatpush.xpose.msra.mxu0 0.0
        %260 = vmatpush.xpose.msra.mxu0 0.0
        %261 = vmatpush.xpose.msra.mxu0 0.0
        %262 = vmatpush.xpose.msra.mxu0 0.0
        %263 = vmatpush.xpose.msra.mxu0 0.0
        %264 = vmatpush.xpose.msra.mxu0 %v245
        %265 = vmatmul.f32.gmra.mxu0 %v240
        %v266 = vpop.f32.mrf.mxu0
        %v267 = vadd.f32 0.0, %v266
        %268 = vdwg.mxu0
        %269 = vmatpush.xpose.msra.mxu0 0.0
        %270 = vmatpush.xpose.msra.mxu0 0.0
        %271 = vmatpush.xpose.msra.mxu0 0.0
        %272 = vmatpush.xpose.msra.mxu0 0.0
        %273 = vmatpush.xpose.msra.mxu0 0.0
        %274 = vmatpush.xpose.msra.mxu0 0.0
        %275 = vmatpush.xpose.msra.mxu0 0.0
        %276 = vmatpush.xpose.msra.mxu0 0.0
        %277 = vmatpush.xpose.msra.mxu0 0.0
        %278 = vmatpush.xpose.msra.mxu0 0.0
        %279 = vmatpush.xpose.msra.mxu0 0.0
        %280 = vmatpush.xpose.msra.mxu0 0.0
        %281 = vmatpush.xpose.msra.mxu0 0.0
        %282 = vmatpush.xpose.msra.mxu0 0.0
        %283 = vmatpush.xpose.msra.mxu0 0.0
        %284 = vmatpush.xpose.msra.mxu0 %v246
        %285 = vmatmul.f32.gmra.mxu0 %v241
        %v286 = vpop.f32.mrf.mxu0
        %v287 = vadd.f32 %v267, %v286
        %288 = vdwg.mxu0
        %v289 = vadd.f32 %v237, %v287
        %vm290 = vcmask 27648
        %291 = vst.msk [vmem:[%s205] sm:$0xf] %vm290, %v289
        %v292 = vld [vmem:[%s216] sm:$0xf]
        %293 = vst [vmem:[#allocation1] ss:$2 sm:$0xff] %v236
        %v294 = vld.sshfl [vmem:[#allocation1] sm:$0xff pattern:$0x75316420]
        %v295 = vld.sshfl [vmem:[#allocation1 + $0x8] sm:$0xff pattern:$0x75316420]
        %vm298 = vcmask 1043456
        %v299 = vsel %vm298, %v294, 0.0
        %v300 = vsel %vm298, %v295, 0.0
        %v301 = vadd.f32 %v299, %v300
        %302 = vadd.xlane.f32.xlu0 %v301
        %v303 = vpop.xlane.xlu0 %302
        %v304 = vadd.f32 %v292, %v303
        %vm305 = vcmask 3072
        %306 = vst.msk [vmem:[%s216] sm:$0xf] %vm305, %v304
        %s307 = sand.u32 %s90, 1
        %s308 = scalar_lea.sflag [#allocation4], %s307
        %s309 = sand.u32 %s90, 1
        %s310 = smul.addr %s309, 4
        %s311 = scalar_lea.vmem [#allocation5], %s310
        %p312 = scmp.lt.s32.totalorder %s25, 1
        %s313 = scalar_select %p312, %s25, 1
        %s314 = smul.addr %s313, 4
        %s315 = scalar_lea.vmem %s3, %s314
        // Predicated region
        $region37: #{tpu_custom_call.1} parent=27 // pred_check
          %p316 = pneg %p100
        $region38: #{tpu_custom_call.1} parent=27 // pred_check_branch
          %318 = sbr.rel (%p316) target = $region40
        $region39: #{tpu_custom_call.1} parent=27 // pred_region
          %320 = vsyncadd %s308, 0
          %s321 = smul.addr %s25, 4
          %s322 = scalar_lea.hbm %s2, %s321
          %s324 = sshll.u32 %s311, 4
          %s325 = int_to_ptr.vmem [resolvable:$true] %s324
          %s326 = sshll.u32 %s322, 4
          %s327 = int_to_ptr.hbm [resolvable:$true] %s326
          %329 = dma.vmem_to_hbm [thread:$0]  %s325, 64, %s327, %s308
        $region40: #{tpu_custom_call.1} parent=27 // pred_fallthru
          _
        // Predicated region
        $region41: #{tpu_custom_call.1} parent=27 // pred_check
          %p330 = pneg %p126
        $region42: #{tpu_custom_call.1} parent=27 // pred_check_branch
          %332 = sbr.rel (%p330) target = $region44
        $region43: #{tpu_custom_call.1} parent=27 // pred_region
          _
        $region44: #{tpu_custom_call.1} parent=27 // pred_fallthru
          _
      $region28: #{tpu_custom_call.1} parent=5 // pred_fallthru
        _
      %p333 = scmp.le.s32.totalorder 2, %s16
      // Predicated region
      $region45: #{tpu_custom_call.1} parent=5 // pred_check
        %p334 = pneg %p333
      $region46: #{tpu_custom_call.1} parent=5 // pred_check_branch
        %336 = sbr.rel (%p334) target = $region48
      $region47: #{tpu_custom_call.1} parent=5 // pred_region
        %s337 = ssub.s32 %s16, 2
        // Predicated region
        $region49: #{tpu_custom_call.1} parent=47 // pred_check
          %p338 = pneg %p106
        $region50: #{tpu_custom_call.1} parent=47 // pred_check_branch
          %340 = sbr.rel (%p338) target = $region52
        $region51: #{tpu_custom_call.1} parent=47 // pred_region
          %s341 = sand.u32 %s91, 1
          %s342 = scalar_lea.sflag [#allocation4], %s341
          %s343 = sand.u32 %s91, 1
          %s344 = smul.addr %s343, 4
          %s345 = scalar_lea.vmem [#allocation5], %s344
          %347 = dma.done %s342, 64
        $region52: #{tpu_custom_call.1} parent=47 // pred_fallthru
          _
        // Predicated region
        $region53: #{tpu_custom_call.1} parent=47 // pred_check
          %p348 = pneg %p132
        $region54: #{tpu_custom_call.1} parent=47 // pred_check_branch
          %350 = sbr.rel (%p348) target = $region56
        $region55: #{tpu_custom_call.1} parent=47 // pred_region
          %p351 = scmp.lt.s32.totalorder %s27, 1
          %s352 = scalar_select %p351, %s27, 1
          %s353 = smul.addr %s352, 4
          %s354 = scalar_lea.vmem %s3, %s353
        $region56: #{tpu_custom_call.1} parent=47 // pred_fallthru
          _
      $region48: #{tpu_custom_call.1} parent=5 // pred_fallthru
        _
    $region6: #{tpu_custom_call.1} parent=1 // loop_footer
      %s20 = sadd.s32 1, %s16
    $region7: #{tpu_custom_call.1} parent=1 // loop_footer_branch
      %15 = sbr.rel target = $region3
    $region8: #{tpu_custom_call.1} parent=1 // loop_exit
      _
    %355 = vsyncpa [#allocation3], 1
    %s356 = scalar_lea.sflag [#allocation3], 1
    %357 = vsyncpa %s356, 1
    %358 = vsyncpa [#allocation4], 1
    %s359 = scalar_lea.sflag [#allocation4], 1
    %360 = vsyncpa %s359, 1

</llo_original>
